<compile_context>
chip_gen: v7x
topology: tpu7x:2x2x1
jax: 0.10.0
libtpu: 0.0.40
codegen_flags: <defaults>
</compile_context>

<pallas_src>
import math

import jax
import jax.numpy as jnp
from jax.experimental import pallas as pl
from jax.experimental.pallas import tpu as pltpu


def _port_embed_kernel(xt_ref, w_ref, b_ref, ot_ref):
    """One batch tile (transposed layout): out^T = W @ x^T + b.

    xt_ref: (n_assets, TB)   -- batch on lanes
    w_ref : (d_model, n_assets)
    b_ref : (d_model, 1)
    ot_ref: (d_model, TB)    -- batch on lanes (lane-dense stores)
    """
    xt = xt_ref[...].astype(jnp.float32)
    w = w_ref[...].astype(jnp.float32)
    b = b_ref[...].astype(jnp.float32)
    acc = jnp.dot(w, xt, preferred_element_type=jnp.float32)  # (d_model, TB)
    ot_ref[...] = (acc + b).astype(ot_ref.dtype)


def init_port_embed_params(key, n_assets, d_model, dtype=jnp.float32):
    """nn.Linear-style U(-1/sqrt(fan_in), +bound) init.

    Weight keeps PyTorch's native (d_model, n_assets) layout (used directly by
    the transposed kernel); bias is stored as a (d_model, 1) column.
    """
    kw, kb = jax.random.split(key)
    bound = 1.0 / math.sqrt(n_assets)
    weight = jax.random.uniform(kw, (d_model, n_assets), dtype,
                                minval=-bound, maxval=bound)
    bias = jax.random.uniform(kb, (d_model, 1), dtype,
                              minval=-bound, maxval=bound)
    return weight, bias


def port_embed(raw_port, weight, bias, *, block_b=2048):
    """raw_port: (..., n_assets); weight: (d_model, n_assets); bias: (d_model, 1)."""
    d_model, n_assets = weight.shape
    lead = raw_port.shape[:-1]
    x = raw_port.reshape(-1, n_assets)
    B = x.shape[0]

    # Lane-dense layout plumbing (wrapper side, not per grid step).
    xt = x.T  # (n_assets, B)

    # Full-extent block for small B (always satisfies the (8,128) rule);
    # otherwise 2048-lane tiles (multiple of 128) so per-step DMA traffic
    # amortizes the ~0.35 us fixed grid-step overhead and the grid stays >= 2
    # for realistic large B (v7x megacore sharding via "parallel").
    tb = B if B <= block_b else block_b

    out_t = pl.pallas_call(
        _port_embed_kernel,
        out_shape=jax.ShapeDtypeStruct((d_model, B), raw_port.dtype),
        grid=(pl.cdiv(B, tb),),
        in_specs=[
            pl.BlockSpec((n_assets, tb), lambda i: (0, i)),      # x^T tile
            pl.BlockSpec((d_model, n_assets), lambda i: (0, 0)),  # resident W
            pl.BlockSpec((d_model, 1), lambda i: (0, 0)),         # resident bias
        ],
        out_specs=pl.BlockSpec((d_model, tb), lambda i: (0, i)),
        compiler_params=pltpu.CompilerParams(
            dimension_semantics=("parallel",)),
    )(xt, weight, bias)

    return out_t.T.reshape(*lead, d_model)


if __name__ == "__main__":
    # Small shapes consistent with the module: n_assets=4, d_model=32, batch=8.
    batch, n_assets, d_model = 8, 4, 32

    key = jax.random.PRNGKey(0)
    kx, kp, kx_big = jax.random.split(key, 3)

    weight, bias = init_port_embed_params(kp, n_assets, d_model)
    raw_port = jax.random.normal(kx, (batch, n_assets), jnp.float32)

    out = jax.block_until_ready(port_embed(raw_port, weight, bias))
    ref = raw_port @ weight.T + bias.reshape(1, -1)
    assert out.shape == (batch, d_model)
    assert jnp.allclose(out, ref, atol=1e-5, rtol=1e-5)

    # Also exercise the multi-step (grid > 1) path with a ragged last tile.
    big_b = 4100  # cdiv(4100, 2048) = 3 grid steps, last tile partially valid
    raw_big = jax.random.normal(kx_big, (big_b, n_assets), jnp.float32)
    out_big = jax.block_until_ready(port_embed(raw_big, weight, bias))
    ref_big = raw_big @ weight.T + bias.reshape(1, -1)
    assert out_big.shape == (big_b, d_model)
    assert jnp.allclose(out_big, ref_big, atol=1e-5, rtol=1e-5)

    print("KERNEL_OK")
</pallas_src>

<mosaic_0001>
module attributes {stable_mosaic.version = 11 : i64} {
  func.func @_port_embed_kernel(%arg0: i32, %arg1: memref<4x8xf32, #tpu.memory_space<vmem>>, %arg2: memref<32x4xf32, #tpu.memory_space<vmem>>, %arg3: memref<32x1xf32, #tpu.memory_space<vmem>>, %arg4: memref<32x8xf32, #tpu.memory_space<vmem>>) attributes {dimension_semantics = [#tpu.dimension_semantics<parallel>], iteration_bounds = array<i64: 1>, scalar_prefetch = 0 : i64, scratch_operands = 0 : i64, tpu.core_type = #tpu.core_type<tc>, window_params = [{transform_indices = @transform_0, window_bounds = array<i64: 4, 8>}, {pipeline_mode = #tpu.pipeline_mode<synchronous>, transform_indices = @transform_1, window_bounds = array<i64: 32, 4>}, {pipeline_mode = #tpu.pipeline_mode<synchronous>, transform_indices = @transform_2, window_bounds = array<i64: 32, 1>}, {transform_indices = @transform_3, window_bounds = array<i64: 32, 8>}]} {
    %c0 = arith.constant 0 : index
    %c0_0 = arith.constant 0 : index
    %0 = vector.load %arg1[%c0, %c0_0] : memref<4x8xf32, #tpu.memory_space<vmem>>, vector<4x8xf32>
    %c0_1 = arith.constant 0 : index
    %c0_2 = arith.constant 0 : index
    %1 = vector.load %arg2[%c0_1, %c0_2] : memref<32x4xf32, #tpu.memory_space<vmem>>, vector<32x4xf32>
    %c0_3 = arith.constant 0 : index
    %c0_4 = arith.constant 0 : index
    %2 = vector.load %arg3[%c0_3, %c0_4] : memref<32x1xf32, #tpu.memory_space<vmem>>, vector<32x1xf32>
    %cst = arith.constant dense<0.000000e+00> : vector<32x8xf32>
    %3 = tpu.matmul %1, %0, %cst {dimension_numbers = #tpu.dot_dimension_numbers<[1], [0], [0], [1], [0, 0, 1, 1], [], []>} : vector<32x4xf32>, vector<4x8xf32>, vector<32x8xf32> -> vector<32x8xf32>
    %4 = vector.broadcast %2 : vector<32x1xf32> to vector<32x8xf32>
    %5 = arith.addf %3, %4 : vector<32x8xf32>
    %c0_5 = arith.constant 0 : index
    %c0_6 = arith.constant 0 : index
    %6 = vector.load %arg4[%c0_5, %c0_6] : memref<32x8xf32, #tpu.memory_space<vmem>>, vector<32x8xf32>
    tpu.vector_store %arg4[%c0_5, %c0_6], %5 {strides = array<i32>} : memref<32x8xf32, #tpu.memory_space<vmem>>, vector<32x8xf32>,
    return
  }
  func.func @transform_0(%arg0: i32) -> (i32, i32) {
    %c0_i32 = arith.constant 0 : i32
    %c0_i32_0 = arith.constant 0 : i32
    return %c0_i32, %arg0 : i32, i32
  }
  func.func @transform_1(%arg0: i32) -> (i32, i32) {
    %c0_i32 = arith.constant 0 : i32
    %c0_i32_0 = arith.constant 0 : i32
    %c0_i32_1 = arith.constant 0 : i32
    return %c0_i32, %c0_i32_0 : i32, i32
  }
  func.func @transform_2(%arg0: i32) -> (i32, i32) {
    %c0_i32 = arith.constant 0 : i32
    %c0_i32_0 = arith.constant 0 : i32
    %c0_i32_1 = arith.constant 0 : i32
    return %c0_i32, %c0_i32_0 : i32, i32
  }
  func.func @transform_3(%arg0: i32) -> (i32, i32) {
    %c0_i32 = arith.constant 0 : i32
    %c0_i32_0 = arith.constant 0 : i32
    return %c0_i32, %arg0 : i32, i32
  }
}

</mosaic_0001>

<llo_original>
// kernel: tpu_custom_call.1
$region0: #{tpu_custom_call.1}
  #allocation0 [shape = 'u32[]', space=smem, size = 0x4, offset = 0x4, fixed_abs, tag = 'smem constant byte address 0x4 - core index']
  #allocation1 [shape = 'u32[144,128]{1,0:T(1,128)}', space=vmem, size = 0x12000, scoped, tag = 'internal scratch']
  %s0 = inlined_call_operand.vmem [shape: f32[4,8], index: 0, kind: input, shape index: {}]
  %s1 = inlined_call_operand.vmem [shape: f32[32,4], index: 1, kind: input, shape index: {}]
  %s2 = inlined_call_operand.vmem [shape: f32[32,1], index: 2, kind: input, shape index: {}]
  %s3 = inlined_call_operand.vmem [shape: f32[32,8], index: 3, kind: output, shape index: {}]
  %s4 = sld [smem:[#allocation0]]
  $region22: #{tpu_custom_call.1} parent=0
    _
  %s6 = ssub.s32 1, %s4
  %s7 = scalar_select 0, %s6, %s4
  // Predicated region
  $region2: #{tpu_custom_call.1} parent=0 // pred_check
    _
  $region3: #{tpu_custom_call.1} parent=0 // pred_check_branch
    %9 = sbr.rel (0) target = $region5
  $region4: #{tpu_custom_call.1} parent=0 // pred_region
    _
  $region5: #{tpu_custom_call.1} parent=0 // pred_fallthru
    _
  // Predicated region
  $region6: #{tpu_custom_call.1} parent=0 // pred_check
    _
  $region7: #{tpu_custom_call.1} parent=0 // pred_check_branch
    %11 = sbr.rel (0) target = $region9
  $region8: #{tpu_custom_call.1} parent=0 // pred_region
    _
  $region9: #{tpu_custom_call.1} parent=0 // pred_fallthru
    _
  // Predicated region
  $region10: #{tpu_custom_call.1} parent=0 // pred_check
    _
  $region11: #{tpu_custom_call.1} parent=0 // pred_check_branch
    %13 = sbr.rel (0) target = $region13
  $region12: #{tpu_custom_call.1} parent=0 // pred_region
    _
  $region13: #{tpu_custom_call.1} parent=0 // pred_fallthru
    _
  %v14 = vld [vmem:[%s0] sm:$0xf]
  %v15 = vld [vmem:[%s1] sm:$0xff]
  %v16 = vld [vmem:[%s1 + $0x8] sm:$0xff]
  %v17 = vld [vmem:[%s1 + $0x10] sm:$0xff]
  %v18 = vld [vmem:[%s1 + $0x18] sm:$0xff]
  %v19 = vld [vmem:[%s2] sm:$0xff]
  %v20 = vld [vmem:[%s2 + $0x8] sm:$0xff]
  %v21 = vld [vmem:[%s2 + $0x10] sm:$0xff]
  %v22 = vld [vmem:[%s2 + $0x18] sm:$0xff]
  %24 = vset.pattern.permute.xlu0 0
  %25 = vperm.xlu0 %24, %v19
  %v26 = vpop.permute.xlu0 %25
  %29 = vset.pattern.permute.xlu0 0
  %30 = vperm.xlu0 %29, %v20
  %v31 = vpop.permute.xlu0 %30
  %34 = vset.pattern.permute.xlu0 0
  %35 = vperm.xlu0 %34, %v21
  %v36 = vpop.permute.xlu0 %35
  %39 = vset.pattern.permute.xlu0 0
  %40 = vperm.xlu0 %39, %v22
  %v41 = vpop.permute.xlu0 %40
  %vm43 = vcmask 31744
  %v45 = vsel %vm43, %v15, 0
  %v48 = vsel %vm43, %v16, 0
  %v51 = vsel %vm43, %v17, 0
  %v54 = vsel %vm43, %v18, 0
  %vm56 = vcmask 1043456
  %v58 = vsel %vm56, %v14, 0
  %60 = vmatprep.subr.mxu0 0.0
  %61 = vmatpush1.msra.mxu0 %v58
  %62 = vmatprep.subr.mxu0 0.0
  %63 = vmatpush1.msra.mxu0 0.0
  %64 = vmatprep.subr.mxu0 0.0
  %65 = vmatpush1.msra.mxu0 0.0
  %66 = vmatprep.subr.mxu0 0.0
  %67 = vmatpush1.msra.mxu0 0.0
  %68 = vmatprep.subr.mxu0 0.0
  %69 = vmatpush1.msra.mxu0 0.0
  %70 = vmatprep.subr.mxu0 0.0
  %71 = vmatpush1.msra.mxu0 0.0
  %72 = vmatprep.subr.mxu0 0.0
  %73 = vmatpush1.msra.mxu0 0.0
  %74 = vmatprep.subr.mxu0 0.0
  %75 = vmatpush1.msra.mxu0 0.0
  %76 = vmatprep.subr.mxu0 0.0
  %77 = vmatpush1.msra.mxu0 0.0
  %78 = vmatprep.subr.mxu0 0.0
  %79 = vmatpush1.msra.mxu0 0.0
  %80 = vmatprep.subr.mxu0 0.0
  %81 = vmatpush1.msra.mxu0 0.0
  %82 = vmatprep.subr.mxu0 0.0
  %83 = vmatpush1.msra.mxu0 0.0
  %84 = vmatprep.subr.mxu0 0.0
  %85 = vmatpush1.msra.mxu0 0.0
  %86 = vmatprep.subr.mxu0 0.0
  %87 = vmatpush1.msra.mxu0 0.0
  %88 = vmatprep.subr.mxu0 0.0
  %89 = vmatpush1.msra.mxu0 0.0
  %90 = vmatprep.subr.mxu0 0.0
  %91 = vmatpush1.msra.mxu0 0.0
  %92 = vmatprep.subr.mxu0 0.0
  %93 = vmatpush1.msra.mxu0 0.0
  %94 = vmatprep.subr.mxu0 0.0
  %95 = vmatpush1.msra.mxu0 0.0
  %96 = vmatprep.subr.mxu0 0.0
  %97 = vmatpush1.msra.mxu0 0.0
  %98 = vmatprep.subr.mxu0 0.0
  %99 = vmatpush1.msra.mxu0 0.0
  %100 = vmatprep.subr.mxu0 0.0
  %101 = vmatpush1.msra.mxu0 0.0
  %102 = vmatprep.subr.mxu0 0.0
  %103 = vmatpush1.msra.mxu0 0.0
  %104 = vmatprep.subr.mxu0 0.0
  %105 = vmatpush1.msra.mxu0 0.0
  %106 = vmatprep.subr.mxu0 0.0
  %107 = vmatpush1.msra.mxu0 0.0
  %108 = vmatprep.subr.mxu0 0.0
  %109 = vmatpush1.msra.mxu0 0.0
  %110 = vmatprep.subr.mxu0 0.0
  %111 = vmatpush1.msra.mxu0 0.0
  %112 = vmatprep.subr.mxu0 0.0
  %113 = vmatpush1.msra.mxu0 0.0
  %114 = vmatprep.subr.mxu0 0.0
  %115 = vmatpush1.msra.mxu0 0.0
  %116 = vmatprep.subr.mxu0 0.0
  %117 = vmatpush1.msra.mxu0 0.0
  %118 = vmatprep.subr.mxu0 0.0
  %119 = vmatpush1.msra.mxu0 0.0
  %120 = vmatprep.subr.mxu0 0.0
  %121 = vmatpush1.msra.mxu0 0.0
  %122 = vmatprep.subr.mxu0 0.0
  %123 = vmatpush1.msra.mxu0 0.0
  %124 = vmatprep.mubr.f32.mxu0 0.0
  %125 = vmatmul.mubr.f32.gmra.mrb[0].mxu0 %v45
  %v126 = vpop.f32.mrb[0].mxu0
  %v127 = vadd.f32 %v26, %v126
  %v128 = vpop.f32.mrb[0].mxu0
  %129 = vmatprep.mubr.f32.mxu0 0.0
  %130 = vmatmul.mubr.f32.gmra.mrb[0].mxu0 %v48
  %v131 = vpop.f32.mrb[0].mxu0
  %v132 = vadd.f32 %v31, %v131
  %v133 = vpop.f32.mrb[0].mxu0
  %134 = vmatprep.mubr.f32.mxu0 0.0
  %135 = vmatmul.mubr.f32.gmra.mrb[0].mxu0 %v51
  %v136 = vpop.f32.mrb[0].mxu0
  %v137 = vadd.f32 %v36, %v136
  %v138 = vpop.f32.mrb[0].mxu0
  %139 = vmatprep.mubr.f32.mxu0 0.0
  %140 = vmatmul.mubr.f32.gmra.mrb[0].mxu0 %v54
  %v141 = vpop.f32.mrb[0].mxu0
  %v142 = vadd.f32 %v41, %v141
  %v143 = vpop.f32.mrb[0].mxu0
  %144 = vdwg.mxu0
  %vm145 = vcmask 64512
  %146 = vst.msk [vmem:[%s3] sm:$0xff] %vm145, %v127
  %147 = vst.msk [vmem:[%s3 + $0x8] sm:$0xff] %vm145, %v132
  %148 = vst.msk [vmem:[%s3 + $0x10] sm:$0xff] %vm145, %v137
  %149 = vst.msk [vmem:[%s3 + $0x18] sm:$0xff] %vm145, %v142
  // Predicated region
  $region14: #{tpu_custom_call.1} parent=0 // pred_check
    _
  $region15: #{tpu_custom_call.1} parent=0 // pred_check_branch
    %151 = sbr.rel (0) target = $region17
  $region16: #{tpu_custom_call.1} parent=0 // pred_region
    _
  $region17: #{tpu_custom_call.1} parent=0 // pred_fallthru
    _
  // Predicated region
  $region18: #{tpu_custom_call.1} parent=0 // pred_check
    _
  $region19: #{tpu_custom_call.1} parent=0 // pred_check_branch
    %153 = sbr.rel (0) target = $region21
  $region20: #{tpu_custom_call.1} parent=0 // pred_region
    _
  $region21: #{tpu_custom_call.1} parent=0 // pred_fallthru
    _

</llo_original>
